<compile_context>
chip_gen: v7x
topology: tpu7x:2x2x1
jax: 0.10.0
libtpu: 0.0.40
codegen_flags: <defaults>
</compile_context>

<pallas_src>
import jax
import jax.numpy as jnp
from jax import lax
from jax.experimental import pallas as pl
from jax.experimental.pallas import tpu as pltpu


def _softplus(t):
    # log(1 + exp(t)), numerically stable; lowers to EUP ops (hidden under DMA).
    return jnp.logaddexp(t, 0.0)


def argproj_kernel(x_ref, wt_ref, b_ref, out_ref):
    # x_ref:  (TILE_N, H)   current tile of activations
    # wt_ref: (3, H)        packed Linear weights, transposed (resident)
    # b_ref:  (3, 1)        packed biases (resident)
    # out_ref:(3, TILE_N)   lane-dense packed output slab
    z = lax.dot_general(
        wt_ref[...], x_ref[...],
        dimension_numbers=(((1,), (1,)), ((), ())),   # contract H on both
        preferred_element_type=jnp.float32,
    )
    z = z + b_ref[...]                                # broadcast (3,1) over TILE_N

    # Domain map (StudentT): df = 2 + softplus, loc = identity, scale = softplus.
    sp = _softplus(z)
    row = lax.broadcasted_iota(jnp.int32, z.shape, 0)
    out_ref[...] = jnp.where(row == 0, 2.0 + sp, jnp.where(row == 1, z, sp))


def _round_up(n, m):
    return ((n + m - 1) // m) * m


def pt_arg_proj(x, weight, bias, *, tile_n=512):
    """x: (B, T, H) float32; weight: (H, 3); bias: (3,).
    Returns (df, loc, scale) each of shape (B, T)."""
    B, T, H = x.shape
    N = B * T
    x2 = x.reshape(N, H)

    # Clamp tile for tiny inputs (lane constraint: out tile last dim % 128 == 0),
    # then pad N up to a tile multiple so every grid step sees a full block.
    tile_n = min(tile_n, _round_up(N, 128))
    n_pad = _round_up(N, tile_n)
    if n_pad != N:
        x2 = jnp.pad(x2, ((0, n_pad - N), (0, 0)))

    wt = weight.T                # (3, H)
    b2 = bias.reshape(3, 1)      # (3, 1)

    out = pl.pallas_call(
        argproj_kernel,
        out_shape=jax.ShapeDtypeStruct((3, n_pad), jnp.float32),
        grid_spec=pltpu.PrefetchScalarGridSpec(
            num_scalar_prefetch=0,
            grid=(n_pad // tile_n,),
            in_specs=[
                pl.BlockSpec((tile_n, H), lambda i: (i, 0)),   # streamed x tiles
                pl.BlockSpec((3, H), lambda i: (0, 0)),        # resident W^T
                pl.BlockSpec((3, 1), lambda i: (0, 0)),        # resident bias
            ],
            out_specs=pl.BlockSpec((3, tile_n), lambda i: (0, i)),
        ),
        compiler_params=pltpu.CompilerParams(
            dimension_semantics=("parallel",),   # independent tiles -> megacore on v7x
        ),
    )(x2, wt, b2)

    # Drop pad columns, split the packed slab, and restore (B, T) — the
    # squeeze(-1) of the PyTorch domain_map is implicit in the packing.
    df = out[0, :N].reshape(B, T)
    loc = out[1, :N].reshape(B, T)
    scale = out[2, :N].reshape(B, T)
    return df, loc, scale


def _reference(x, weight, bias):
    z = jnp.einsum("bth,hk->btk", x, weight) + bias
    df = 2.0 + jax.nn.softplus(z[..., 0])
    loc = z[..., 1]
    scale = jax.nn.softplus(z[..., 2])
    return df, loc, scale


if __name__ == "__main__":
    key = jax.random.PRNGKey(0)
    B, T, H = 2, 8, 32

    kx, kw, kb = jax.random.split(key, 3)
    x = jax.random.normal(kx, (B, T, H), dtype=jnp.float32)

    # Deterministic "Linear" params: three Linear(H, 1) layers, concatenated.
    # PyTorch weight shape per layer is (1, H); we store the transpose packed
    # into W: (H, 3).
    weight = 0.1 * jax.random.normal(kw, (H, 3), dtype=jnp.float32)
    bias = 0.1 * jax.random.normal(kb, (3,), dtype=jnp.float32)

    df, loc, scale = pt_arg_proj(x, weight, bias)
    jax.block_until_ready((df, loc, scale))

    df_r, loc_r, scale_r = _reference(x, weight, bias)
    assert jnp.allclose(df, df_r, atol=1e-5, rtol=1e-5)
    assert jnp.allclose(loc, loc_r, atol=1e-5, rtol=1e-5)
    assert jnp.allclose(scale, scale_r, atol=1e-5, rtol=1e-5)

    print("KERNEL_OK")
</pallas_src>

<mosaic_0001>
module attributes {stable_mosaic.version = 11 : i64} {
  func.func @argproj_kernel(%arg0: i32, %arg1: memref<128x32xf32, #tpu.memory_space<vmem>>, %arg2: memref<3x32xf32, #tpu.memory_space<vmem>>, %arg3: memref<3x1xf32, #tpu.memory_space<vmem>>, %arg4: memref<3x128xf32, #tpu.memory_space<vmem>>) attributes {dimension_semantics = [#tpu.dimension_semantics<parallel>], iteration_bounds = array<i64: 1>, scalar_prefetch = 0 : i64, scratch_operands = 0 : i64, tpu.core_type = #tpu.core_type<tc>, window_params = [{transform_indices = @transform_0, window_bounds = array<i64: 128, 32>}, {pipeline_mode = #tpu.pipeline_mode<synchronous>, transform_indices = @transform_1, window_bounds = array<i64: 3, 32>}, {pipeline_mode = #tpu.pipeline_mode<synchronous>, transform_indices = @transform_2, window_bounds = array<i64: 3, 1>}, {transform_indices = @transform_3, window_bounds = array<i64: 3, 128>}]} {
    %c0 = arith.constant 0 : index
    %c0_0 = arith.constant 0 : index
    %0 = vector.load %arg2[%c0, %c0_0] : memref<3x32xf32, #tpu.memory_space<vmem>>, vector<3x32xf32>
    %c0_1 = arith.constant 0 : index
    %c0_2 = arith.constant 0 : index
    %1 = vector.load %arg1[%c0_1, %c0_2] : memref<128x32xf32, #tpu.memory_space<vmem>>, vector<128x32xf32>
    %cst = arith.constant dense<0.000000e+00> : vector<3x128xf32>
    %2 = tpu.matmul %0, %1, %cst {dimension_numbers = #tpu.dot_dimension_numbers<[1], [1], [0], [0], [0, 0, 1, 0], [], []>} : vector<3x32xf32>, vector<128x32xf32>, vector<3x128xf32> -> vector<3x128xf32>
    %c0_3 = arith.constant 0 : index
    %c0_4 = arith.constant 0 : index
    %3 = vector.load %arg3[%c0_3, %c0_4] : memref<3x1xf32, #tpu.memory_space<vmem>>, vector<3x1xf32>
    %4 = vector.broadcast %3 : vector<3x1xf32> to vector<3x128xf32>
    %5 = arith.addf %2, %4 : vector<3x128xf32>
    %cst_5 = arith.constant 0.000000e+00 : f32
    %6 = vector.broadcast %cst_5 : f32 to vector<3x128xf32>
    %7 = arith.maximumf %5, %6 : vector<3x128xf32>
    %8 = vector.broadcast %cst_5 : f32 to vector<3x128xf32>
    %9 = arith.subf %5, %8 : vector<3x128xf32>
    %10 = arith.cmpf one, %9, %9 : vector<3x128xf32>
    %11 = vector.broadcast %cst_5 : f32 to vector<3x128xf32>
    %12 = arith.addf %5, %11 : vector<3x128xf32>
    %13 = math.absf %9 : vector<3x128xf32>
    %cst_6 = arith.constant 0.000000e+00 : f32
    %14 = vector.broadcast %cst_6 : f32 to vector<3x128xf32>
    %15 = arith.subf %14, %13 : vector<3x128xf32>
    %16 = math.exp %15 : vector<3x128xf32>
    %17 = math.log1p %16 : vector<3x128xf32>
    %18 = arith.addf %7, %17 : vector<3x128xf32>
    %19 = arith.select %10, %12, %18 : vector<3x128xi1>, vector<3x128xf32>
    %20 = tpu.iota {dimensions = array<i32: 0>} : vector<3x128xi32>
    %c0_i32 = arith.constant 0 : i32
    %21 = vector.broadcast %c0_i32 : i32 to vector<3x128xi32>
    %22 = arith.cmpi eq, %20, %21 : vector<3x128xi32>
    %cst_7 = arith.constant 2.000000e+00 : f32
    %23 = vector.broadcast %cst_7 : f32 to vector<3x128xf32>
    %24 = arith.addf %23, %19 : vector<3x128xf32>
    %c1_i32 = arith.constant 1 : i32
    %25 = vector.broadcast %c1_i32 : i32 to vector<3x128xi32>
    %26 = arith.cmpi eq, %20, %25 : vector<3x128xi32>
    %27 = arith.select %26, %5, %19 : vector<3x128xi1>, vector<3x128xf32>
    %28 = arith.select %22, %24, %27 : vector<3x128xi1>, vector<3x128xf32>
    %c0_8 = arith.constant 0 : index
    %c0_9 = arith.constant 0 : index
    %29 = vector.load %arg4[%c0_8, %c0_9] : memref<3x128xf32, #tpu.memory_space<vmem>>, vector<3x128xf32>
    tpu.vector_store %arg4[%c0_8, %c0_9], %28 {strides = array<i32>} : memref<3x128xf32, #tpu.memory_space<vmem>>, vector<3x128xf32>,
    return
  }
  func.func @transform_0(%arg0: i32) -> (i32, i32) {
    %c0_i32 = arith.constant 0 : i32
    %c0_i32_0 = arith.constant 0 : i32
    return %arg0, %c0_i32 : i32, i32
  }
  func.func @transform_1(%arg0: i32) -> (i32, i32) {
    %c0_i32 = arith.constant 0 : i32
    %c0_i32_0 = arith.constant 0 : i32
    %c0_i32_1 = arith.constant 0 : i32
    return %c0_i32, %c0_i32_0 : i32, i32
  }
  func.func @transform_2(%arg0: i32) -> (i32, i32) {
    %c0_i32 = arith.constant 0 : i32
    %c0_i32_0 = arith.constant 0 : i32
    %c0_i32_1 = arith.constant 0 : i32
    return %c0_i32, %c0_i32_0 : i32, i32
  }
  func.func @transform_3(%arg0: i32) -> (i32, i32) {
    %c0_i32 = arith.constant 0 : i32
    %c0_i32_0 = arith.constant 0 : i32
    return %c0_i32, %arg0 : i32, i32
  }
}

</mosaic_0001>

<llo_original>
// kernel: tpu_custom_call.1
$region0: #{tpu_custom_call.1}
  #allocation0 [shape = 'u32[]', space=smem, size = 0x4, offset = 0x4, fixed_abs, tag = 'smem constant byte address 0x4 - core index']
  #allocation1 [shape = 'u32[144,128]{1,0:T(1,128)}', space=vmem, size = 0x12000, scoped, tag = 'internal scratch']
  %s0 = inlined_call_operand.vmem [shape: f32[128,32], index: 0, kind: input, shape index: {}]
  %s1 = inlined_call_operand.vmem [shape: f32[3,32], index: 1, kind: input, shape index: {}]
  %s2 = inlined_call_operand.vmem [shape: f32[3,1], index: 2, kind: input, shape index: {}]
  %s3 = inlined_call_operand.hbm [shape: f32[3,128], index: 3, kind: output, shape index: {}]
  %s4 = sld [smem:[#allocation0]]
  $region22: #{tpu_custom_call.1} parent=0
    _
  %s6 = ssub.s32 1, %s4
  %s7 = scalar_select 0, %s6, %s4
  $region1: #{tpu_custom_call.1} parent=0
    #allocation2 [shape = 'u8[2048]{0}', space=vmem, size = 0x800, scoped, tag = 'output window, operand 0, single buffered']
    #allocation3 [shape = 's32[1]{0}', space=sflag, size = 0x4, scoped, tag = 'scoped memory for tpu_custom_call.1']
    %8 = vsyncpa [#allocation3], 0
    // Predicated region
    $region2: #{tpu_custom_call.1} parent=1 // pred_check
      _
    $region3: #{tpu_custom_call.1} parent=1 // pred_check_branch
      %10 = sbr.rel (0) target = $region5
    $region4: #{tpu_custom_call.1} parent=1 // pred_region
      _
    $region5: #{tpu_custom_call.1} parent=1 // pred_fallthru
      _
    // Predicated region
    $region6: #{tpu_custom_call.1} parent=1 // pred_check
      _
    $region7: #{tpu_custom_call.1} parent=1 // pred_check_branch
      %12 = sbr.rel (0) target = $region9
    $region8: #{tpu_custom_call.1} parent=1 // pred_region
      _
    $region9: #{tpu_custom_call.1} parent=1 // pred_fallthru
      _
    // Predicated region
    $region10: #{tpu_custom_call.1} parent=1 // pred_check
      _
    $region11: #{tpu_custom_call.1} parent=1 // pred_check_branch
      %14 = sbr.rel (0) target = $region13
    $region12: #{tpu_custom_call.1} parent=1 // pred_region
      _
    $region13: #{tpu_custom_call.1} parent=1 // pred_fallthru
      _
    %v15 = vld [vmem:[%s1] sm:$0x7]
    %v16 = vld [vmem:[%s0] sm:$0xff]
    %v17 = vld [vmem:[%s0 + $0x8] sm:$0xff]
    %v18 = vld [vmem:[%s0 + $0x10] sm:$0xff]
    %v19 = vld [vmem:[%s0 + $0x18] sm:$0xff]
    %v20 = vld [vmem:[%s0 + $0x20] sm:$0xff]
    %v21 = vld [vmem:[%s0 + $0x28] sm:$0xff]
    %v22 = vld [vmem:[%s0 + $0x30] sm:$0xff]
    %v23 = vld [vmem:[%s0 + $0x38] sm:$0xff]
    %v24 = vld [vmem:[%s0 + $0x40] sm:$0xff]
    %v25 = vld [vmem:[%s0 + $0x48] sm:$0xff]
    %v26 = vld [vmem:[%s0 + $0x50] sm:$0xff]
    %v27 = vld [vmem:[%s0 + $0x58] sm:$0xff]
    %v28 = vld [vmem:[%s0 + $0x60] sm:$0xff]
    %v29 = vld [vmem:[%s0 + $0x68] sm:$0xff]
    %v30 = vld [vmem:[%s0 + $0x70] sm:$0xff]
    %v31 = vld [vmem:[%s0 + $0x78] sm:$0xff]
    %v32 = vld [vmem:[%s2] sm:$0x7]
    %34 = vset.pattern.permute.xlu0 0
    %35 = vperm.xlu0 %34, %v32
    %v36 = vpop.permute.xlu0 %35
    %vm38 = vcmask 261120
    %v40 = vsel %vm38, %v15, 0
    %v43 = vsel %vm38, %v16, 0
    %v46 = vsel %vm38, %v17, 0
    %v49 = vsel %vm38, %v18, 0
    %v52 = vsel %vm38, %v19, 0
    %v55 = vsel %vm38, %v20, 0
    %v58 = vsel %vm38, %v21, 0
    %v61 = vsel %vm38, %v22, 0
    %v64 = vsel %vm38, %v23, 0
    %v67 = vsel %vm38, %v24, 0
    %v70 = vsel %vm38, %v25, 0
    %v73 = vsel %vm38, %v26, 0
    %v76 = vsel %vm38, %v27, 0
    %v79 = vsel %vm38, %v28, 0
    %v82 = vsel %vm38, %v29, 0
    %v85 = vsel %vm38, %v30, 0
    %v88 = vsel %vm38, %v31, 0
    %90 = vmatprep.subr.mxu0 0.0
    %91 = vmatpush1.xpose.msra.mxu0 %v43
    %92 = vmatprep.subr.mxu0 0.0
    %93 = vmatpush1.xpose.msra.mxu0 %v46
    %94 = vmatprep.subr.mxu0 0.0
    %95 = vmatpush1.xpose.msra.mxu0 %v49
    %96 = vmatprep.subr.mxu0 0.0
    %97 = vmatpush1.xpose.msra.mxu0 %v52
    %98 = vmatprep.subr.mxu0 0.0
    %99 = vmatpush1.xpose.msra.mxu0 %v55
    %100 = vmatprep.subr.mxu0 0.0
    %101 = vmatpush1.xpose.msra.mxu0 %v58
    %102 = vmatprep.subr.mxu0 0.0
    %103 = vmatpush1.xpose.msra.mxu0 %v61
    %104 = vmatprep.subr.mxu0 0.0
    %105 = vmatpush1.xpose.msra.mxu0 %v64
    %106 = vmatprep.subr.mxu0 0.0
    %107 = vmatpush1.xpose.msra.mxu0 %v67
    %108 = vmatprep.subr.mxu0 0.0
    %109 = vmatpush1.xpose.msra.mxu0 %v70
    %110 = vmatprep.subr.mxu0 0.0
    %111 = vmatpush1.xpose.msra.mxu0 %v73
    %112 = vmatprep.subr.mxu0 0.0
    %113 = vmatpush1.xpose.msra.mxu0 %v76
    %114 = vmatprep.subr.mxu0 0.0
    %115 = vmatpush1.xpose.msra.mxu0 %v79
    %116 = vmatprep.subr.mxu0 0.0
    %117 = vmatpush1.xpose.msra.mxu0 %v82
    %118 = vmatprep.subr.mxu0 0.0
    %119 = vmatpush1.xpose.msra.mxu0 %v85
    %120 = vmatprep.subr.mxu0 0.0
    %121 = vmatpush1.xpose.msra.mxu0 %v88
    %122 = vmatprep.subr.mxu0 0.0
    %123 = vmatpush1.xpose.msra.mxu0 0.0
    %124 = vmatprep.subr.mxu0 0.0
    %125 = vmatpush1.xpose.msra.mxu0 0.0
    %126 = vmatprep.subr.mxu0 0.0
    %127 = vmatpush1.xpose.msra.mxu0 0.0
    %128 = vmatprep.subr.mxu0 0.0
    %129 = vmatpush1.xpose.msra.mxu0 0.0
    %130 = vmatprep.subr.mxu0 0.0
    %131 = vmatpush1.xpose.msra.mxu0 0.0
    %132 = vmatprep.subr.mxu0 0.0
    %133 = vmatpush1.xpose.msra.mxu0 0.0
    %134 = vmatprep.subr.mxu0 0.0
    %135 = vmatpush1.xpose.msra.mxu0 0.0
    %136 = vmatprep.subr.mxu0 0.0
    %137 = vmatpush1.xpose.msra.mxu0 0.0
    %138 = vmatprep.subr.mxu0 0.0
    %139 = vmatpush1.xpose.msra.mxu0 0.0
    %140 = vmatprep.subr.mxu0 0.0
    %141 = vmatpush1.xpose.msra.mxu0 0.0
    %142 = vmatprep.subr.mxu0 0.0
    %143 = vmatpush1.xpose.msra.mxu0 0.0
    %144 = vmatprep.subr.mxu0 0.0
    %145 = vmatpush1.xpose.msra.mxu0 0.0
    %146 = vmatprep.subr.mxu0 0.0
    %147 = vmatpush1.xpose.msra.mxu0 0.0
    %148 = vmatprep.subr.mxu0 0.0
    %149 = vmatpush1.xpose.msra.mxu0 0.0
    %150 = vmatprep.subr.mxu0 0.0
    %151 = vmatpush1.xpose.msra.mxu0 0.0
    %152 = vmatprep.subr.mxu0 0.0
    %153 = vmatpush1.xpose.msra.mxu0 0.0
    %154 = vmatprep.mubr.f32.mxu0 0.0
    %155 = vmatmul.mubr.f32.gmra.mrb[0].mxu0 %v40
    %v156 = vpop.f32.mrb[0].mxu0
    %v157 = vadd.f32 %v36, %v156
    %v158 = vpop.f32.mrb[0].mxu0
    %159 = vdwg.mxu0
    %v160 = vmax.f32 %v157, 0.0
    %vm161 = vcmp.ne.f32.partialorder %v157, %v157
    %v162 = vadd.f32 %v157, 0.0
    %v163 = vand.u32 2147483647, %v157
    %v164 = vsub.f32 0.0, %v163
    %v165 = vmul.f32 %v164, 1.442695
    %v166 = vpow.pop %v165
    %v167 = vadd.f32 %v166, 1.0
    %v168 = vlog2.pop %v167
    %v169 = vmul.f32 %v168, 0.6931472
    %v170 = vmul.f32 -0.5, %v166
    %v171 = vadd.f32 %v170, 1.0
    %v172 = vmul.f32 %v171, %v166
    %v173 = vand.u32 2147483647, %v166
    %vm174 = vcmp.lt.f32.partialorder %v173, 0.0004427343
    %v175 = vsel %vm174, %v172, %v169
    %v176 = vadd.f32 %v160, %v175
    %v177 = vsel %vm161, %v162, %v176
    %v178 = vlaneseq
    %v179 = vshrl.u32 %v178, 7
    %vm180 = vcmp.eq.s32.totalorder %v179, 0
    %v181 = vadd.f32 %v177, 2.0
    %vm182 = vcmp.eq.s32.totalorder %v179, 1
    %v183 = vsel %vm182, %v157, %v177
    %v184 = vsel %vm180, %v181, %v183
    %185 = vst [vmem:[#allocation2] sm:$0x7] %v184
    // Predicated region
    $region14: #{tpu_custom_call.1} parent=1 // pred_check
      _
    $region15: #{tpu_custom_call.1} parent=1 // pred_check_branch
      %187 = sbr.rel (0) target = $region17
    $region16: #{tpu_custom_call.1} parent=1 // pred_region
      %s189 = ssub.s32 64, 64
      %190 = vsyncadd [#allocation3], %s189
      %s192 = sshll.u32 [#allocation2], 4
      %s193 = int_to_ptr.vmem [resolvable:$true] %s192
      %195 = dma.vmem_to_hbm [thread:$0]  %s193, 64, %s3, [#allocation3]
    $region17: #{tpu_custom_call.1} parent=1 // pred_fallthru
      _
    // Predicated region
    $region18: #{tpu_custom_call.1} parent=1 // pred_check
      _
    $region19: #{tpu_custom_call.1} parent=1 // pred_check_branch
      %197 = sbr.rel (0) target = $region21
    $region20: #{tpu_custom_call.1} parent=1 // pred_region
      %198 = dma.done [#allocation3], 64
    $region21: #{tpu_custom_call.1} parent=1 // pred_fallthru
      _
    %199 = vsyncpa [#allocation3], 1

</llo_original>
